<compile_context>
chip_gen: v7x
topology: tpu7x:2x2x1
jax: 0.10.0
libtpu: 0.0.40
codegen_flags: <defaults>
</compile_context>

<pallas_src>
import jax
import jax.numpy as jnp
from jax.experimental import pallas as pl
from jax.experimental.pallas import tpu as pltpu

FEAT = 512           # resnet18 feature dim and lesion 'pool' channel dim (512+512 = f1.in_features)
NUM_CLASSES = 5      # DR grading classes
CPAD = 128           # lane-dense padded class dimension (one full 128-lane tile)
NEG = -1.0e30        # bias value for padded logit lanes -> exp() == 0 in the softmax


# ----------------------------------------------------------------------------
# Hardware probes (trace-time only; safe fallbacks if unavailable).
# ----------------------------------------------------------------------------
def _vmem_capacity_bytes():
    try:
        info = pltpu.get_tpu_info()
        cap = getattr(info, "vmem_capacity_bytes", None)
        if cap:
            return int(cap)
    except Exception:
        pass
    return 64 * 1024 * 1024          # conservative default: v7x has the smallest VMEM


def _tpu_generation():
    try:
        kind = jax.devices()[0].device_kind.lower()
        for g in (7, 6, 5, 4, 3, 2):
            if ("v%d" % g) in kind:
                return g
    except Exception:
        pass
    return 6                          # unknown -> assume modern chip


# ----------------------------------------------------------------------------
# Pallas kernel: spatial pool + (concat as two weight-slice dots) + bias
#                + lane-dense softmax, fused.  One batch tile per grid step.
# ----------------------------------------------------------------------------
def _make_head_kernel(matmul_first: bool):
    def dr_head_kernel(resnet_ref, lesion_ref, w_ref, b_ref, out_ref):
        tb, hw, feat = lesion_ref.shape

        if matmul_first:
            # MXU-first (v6e/v7x): matmul every spatial position in bf16 with f32
            # accumulation, then reduce over HW on 128 lanes (4x less VPU work than a
            # 512-lane f32 upcast+sum), no bf16 rounding of the pooled sum.
            les2d = lesion_ref[...].reshape(tb * hw, feat)                   # layout no-op
            pos = jnp.dot(les2d, w_ref[feat:, :],
                          preferred_element_type=jnp.float32)               # (tb*hw, 128)
            lesion_logits = jnp.sum(pos.reshape(tb, hw, CPAD), axis=1)       # (tb, 128) f32
        else:
            # VPU-first (v5e / older): spatial sum in f32 (DMA dominates comfortably),
            # then a tiny f32 dot -- pooled sum is never rounded to bf16.
            lesion_sum = jnp.sum(lesion_ref[...].astype(jnp.float32), axis=1)       # (tb,512)
            lesion_logits = jnp.dot(lesion_sum, w_ref[feat:, :].astype(jnp.float32),
                                    preferred_element_type=jnp.float32)             # (tb,128)

        # torch.cat((resnet, lesion), dim=1) @ W + b  ==  two partial dots against static
        # slices of the (1024, 128) weight -- no (tb, 1024) temporary in VMEM.
        logits = (
            jnp.dot(resnet_ref[...], w_ref[:feat, :],
                    preferred_element_type=jnp.float32)
            + lesion_logits
            + b_ref[...]
        )                                                                    # (tb, 128) f32

        # F.softmax(dim=1) over the padded 128 lanes; padded lanes carry a -1e30 bias so
        # their exp() is exactly 0 and they do not perturb the denominator.
        m = jnp.max(logits, axis=1, keepdims=True)
        e = jnp.exp(logits - m)
        denom = jnp.sum(e, axis=1, keepdims=True)
        r = pl.reciprocal(denom, approx=True)          # EUP seed (its own VLIW slot)
        r = r * (2.0 - denom * r)                      # one cheap Newton step on the VPU
        out_ref[...] = e * r

    return dr_head_kernel


def dr_grading_head(resnet_feat, lesion_feat, w_t, b):
    """resnet_feat (B,512), lesion_feat (B,HW,512), w_t (1024,C) f32, b (C,) f32."""
    B, HW, _ = lesion_feat.shape
    C = w_t.shape[1]

    vmem_cap = _vmem_capacity_bytes()
    gen = _tpu_generation()
    # MXU-first lesion path only where the MXU has slack vs HBM (v6e/v7x) and the
    # (tb, HW, 512) -> (tb*HW, 512) collapse is a layout no-op.
    matmul_first = (gen >= 6) and (HW % 16 == 0)

    # Fold the 1/HW average-pool scale into the lesion half of the weight, then
    # zero-pad the class dim to a lane-dense 128; mask padded lanes via the bias.
    w_t = w_t.astype(jnp.float32)
    w_scaled = jnp.concatenate([w_t[:FEAT, :], w_t[FEAT:, :] * (1.0 / HW)], axis=0)
    w_pad = jnp.zeros((2 * FEAT, CPAD), jnp.float32).at[:, :C].set(w_scaled)
    bias_pad = jnp.full((1, CPAD), NEG, jnp.float32).at[:, :C].set(
        b.astype(jnp.float32).reshape(1, C))

    # bf16 at the pallas_call boundary halves HBM traffic for the memory-bound lesion
    # slab; the backbone already emits bf16 (no-op cast, fuses under jit).  The kernel
    # accumulates / softmaxes in f32.
    resnet_bf = resnet_feat.astype(jnp.bfloat16)
    lesion_bf = lesion_feat.astype(jnp.bfloat16)
    w_bf = w_pad.astype(jnp.bfloat16)

    # ---- batch tile sizing -------------------------------------------------
    # Per-buffer budget = VMEM/8, so the double-buffered lesion pair is <= VMEM/4 and
    # the per-grid-step fixed overhead (~0.35 us) is amortized (v7x 64 MiB -> ~8 MiB
    # per buffer, v5e/v6e 128 MiB -> ~16 MiB per buffer).
    bytes_per_row = HW * FEAT * 2                         # one bf16 lesion row
    per_buf_budget = max(vmem_cap // 8, 1 << 20)
    tb_target = per_buf_budget // max(bytes_per_row, 1)
    tb_target = max(16, min(1024, (tb_target // 16) * 16))  # multiple of 16 (bf16 sublane pack)

    pad_tail = False
    if B <= tb_target:
        tb = B                                            # single tile == full batch, no padding
    else:
        # Largest multiple-of-16 divisor of B under the budget -> no jnp.pad of the big
        # lesion slab.  Prefer an even step count so ("parallel",) shards cleanly over
        # v7x's two TensorCores.
        tb = 0
        cand = (min(tb_target, B) // 16) * 16
        while cand >= 16:
            if B % cand == 0:
                if tb == 0:
                    tb = cand                             # largest divisor so far
                if (B // cand) % 2 == 0:
                    tb = cand
                    break
                if cand * 2 < tb:                         # don't shrink >2x chasing evenness
                    break
            cand -= 16
        if tb == 0:
            # TODO(synk): no multiple-of-16 divisor of B; fall back to padding the tail.
            # A masked last tile (scalar-prefetch B + pl.when) would avoid this copy.
            tb = tb_target
            pad_tail = True

    B_pad = pl.cdiv(B, tb) * tb
    if pad_tail and B_pad != B:
        resnet_bf = jnp.pad(resnet_bf, ((0, B_pad - B), (0, 0)))
        lesion_bf = jnp.pad(lesion_bf, ((0, B_pad - B), (0, 0), (0, 0)))

    # Scoped-VMEM limit sized to the chosen tiles (~70% of physical; working set is
    # ~2 lesion buffers + f32 intermediate + weights, well under this).
    vmem_limit = int(vmem_cap * 0.70)

    out = pl.pallas_call(
        _make_head_kernel(matmul_first),
        out_shape=jax.ShapeDtypeStruct((B_pad, CPAD), jnp.float32),
        grid_spec=pltpu.PrefetchScalarGridSpec(
            num_scalar_prefetch=0,
            grid=(B_pad // tb,),
            in_specs=[
                pl.BlockSpec((tb, FEAT), lambda i: (i, 0)),          # resnet tile
                pl.BlockSpec((tb, HW, FEAT), lambda i: (i, 0, 0)),   # lesion tile (pipelined)
                pl.BlockSpec((2 * FEAT, CPAD), lambda i: (0, 0)),    # weight, VMEM-resident
                pl.BlockSpec((1, CPAD), lambda i: (0, 0)),           # bias, VMEM-resident
            ],
            out_specs=pl.BlockSpec((tb, CPAD), lambda i: (i, 0)),
        ),
        compiler_params=pltpu.CompilerParams(
            dimension_semantics=("parallel",),                       # shard over v7x's 2 TCs
            vmem_limit_bytes=vmem_limit,
        ),
    )(resnet_bf, lesion_bf, w_bf, bias_pad)

    return out[:B, :C]


# ----------------------------------------------------------------------------
# Deterministic stand-in backbones (plain-JAX glue producing the feature shapes
# the real submodules would produce).  They emit bf16 so the downcast fuses into
# the producer instead of a standalone full-slab pass.
# ----------------------------------------------------------------------------
def resnet18_standin(x_nhwc, w_proj):
    # global average pool over spatial + linear projection to 512 features
    pooled = jnp.mean(x_nhwc, axis=(1, 2))                                   # (B, Cin)
    return (pooled @ w_proj).astype(jnp.bfloat16)                            # (B, 512) bf16


def lesion_backbone_standin(x_nhwc, w_proj):
    # 1x1 "conv" Cin -> 512, then 2x2 average pool (mimics a 'pool' feature map)
    B, H, W, Cin = x_nhwc.shape
    feat = jnp.einsum("bhwc,cd->bhwd", x_nhwc, w_proj)                       # (B,H,W,512)
    feat = feat.reshape(B, H // 2, 2, W // 2, 2, FEAT).mean(axis=(2, 4))     # (B,H/2,W/2,512)
    return feat.astype(jnp.bfloat16)                                          # bf16


def dr_grading_subnetwork_forward(x_nchw, params):
    # x is NCHW (PyTorch convention); convert to NHWC for the JAX/Pallas side.
    x_nhwc = jnp.transpose(x_nchw, (0, 2, 3, 1))
    feats_resnet = resnet18_standin(x_nhwc, params["resnet_proj"])           # (B, 512)
    feats_lesion = lesion_backbone_standin(x_nhwc, params["lesion_proj"])    # (B, h, w, 512)
    B, h, w, C = feats_lesion.shape
    lesion_flat = feats_lesion.reshape(B, h * w, C)                          # (B, HW, 512)
    return dr_grading_head(feats_resnet, lesion_flat,
                           params["f1_w_t"], params["f1_b"])                 # (B, num_classes)


def dr_grading_head_ref(resnet_feat, lesion_feat, w_t, b):
    # Pure-JAX f32 reference of the head, for a sanity check only.
    combined = jnp.concatenate([resnet_feat, jnp.mean(lesion_feat, axis=1)], axis=1)
    logits = combined @ w_t + b.reshape(1, -1)
    return jax.nn.softmax(logits, axis=1)


def init_params(key, in_channels, num_classes):
    k1, k2, k3, k4 = jax.random.split(key, 4)
    scale = 1.0 / jnp.sqrt(1024.0)
    return {
        "resnet_proj": jax.random.normal(k1, (in_channels, FEAT), jnp.float32) * 0.05,
        "lesion_proj": jax.random.normal(k2, (in_channels, FEAT), jnp.float32) * 0.05,
        # PyTorch nn.Linear stores (out, in); we keep the transposed (in, out) layout.
        "f1_w_t": jax.random.uniform(k3, (2 * FEAT, num_classes), jnp.float32,
                                     -scale, scale),
        "f1_b": jax.random.uniform(k4, (num_classes,), jnp.float32, -scale, scale),
    }


if __name__ == "__main__":
    key = jax.random.PRNGKey(0)
    kx, kp = jax.random.split(key)

    B, Cin, H, W = 2, 4, 16, 16
    x = jax.random.normal(kx, (B, Cin, H, W), jnp.float32)   # NCHW like PyTorch

    params = init_params(kp, Cin, NUM_CLASSES)

    fwd = jax.jit(dr_grading_subnetwork_forward)
    out = jax.block_until_ready(fwd(x, params))

    assert out.shape == (B, NUM_CLASSES)
    # softmax rows sum to 1 (Newton-refined reciprocal keeps this tight)
    assert jnp.allclose(jnp.sum(out, axis=1), 1.0, atol=1e-4)

    # agreement with the f32 pure-JAX reference (kernel consumes bf16 features/weights)
    x_nhwc = jnp.transpose(x, (0, 2, 3, 1))
    fr = resnet18_standin(x_nhwc, params["resnet_proj"]).astype(jnp.float32)
    fl = lesion_backbone_standin(x_nhwc, params["lesion_proj"]).astype(jnp.float32)
    fl = fl.reshape(B, -1, FEAT)
    ref = dr_grading_head_ref(fr, fl, params["f1_w_t"], params["f1_b"])
    assert jnp.allclose(out, ref, atol=5e-2)

    print("KERNEL_OK")
</pallas_src>

<mosaic_0001>
module attributes {stable_mosaic.version = 11 : i64} {
  func.func @dr_head_kernel(%arg0: i32, %arg1: memref<2x512xbf16, #tpu.memory_space<vmem>>, %arg2: memref<2x64x512xbf16, #tpu.memory_space<vmem>>, %arg3: memref<1024x128xbf16, #tpu.memory_space<vmem>>, %arg4: memref<1x128xf32, #tpu.memory_space<vmem>>, %arg5: memref<2x128xf32, #tpu.memory_space<vmem>>) attributes {dimension_semantics = [#tpu.dimension_semantics<parallel>], iteration_bounds = array<i64: 1>, scalar_prefetch = 0 : i64, scratch_operands = 0 : i64, tpu.core_type = #tpu.core_type<tc>, window_params = [{transform_indices = @transform_0, window_bounds = array<i64: 2, 512>}, {transform_indices = @transform_1, window_bounds = array<i64: 2, 64, 512>}, {pipeline_mode = #tpu.pipeline_mode<synchronous>, transform_indices = @transform_2, window_bounds = array<i64: 1024, 128>}, {pipeline_mode = #tpu.pipeline_mode<synchronous>, transform_indices = @transform_3, window_bounds = array<i64: 1, 128>}, {transform_indices = @transform_4, window_bounds = array<i64: 2, 128>}]} {
    %c0 = arith.constant 0 : index
    %c0_0 = arith.constant 0 : index
    %c0_1 = arith.constant 0 : index
    %0 = vector.load %arg2[%c0, %c0_0, %c0_1] : memref<2x64x512xbf16, #tpu.memory_space<vmem>>, vector<2x64x512xbf16>
    %1 = vector.shape_cast %0 : vector<2x64x512xbf16> to vector<128x512xbf16>
    %c512 = arith.constant 512 : index
    %c0_2 = arith.constant 0 : index
    %2 = vector.load %arg3[%c512, %c0_2] : memref<1024x128xbf16, #tpu.memory_space<vmem>>, vector<512x128xbf16>
    %cst = arith.constant dense<0.000000e+00> : vector<128x128xf32>
    %3 = tpu.matmul %1, %2, %cst {dimension_numbers = #tpu.dot_dimension_numbers<[1], [0], [0], [1], [0, 0, 1, 1], [], []>} : vector<128x512xbf16>, vector<512x128xbf16>, vector<128x128xf32> -> vector<128x128xf32>
    %4 = vector.shape_cast %3 : vector<128x128xf32> to vector<2x64x128xf32>
    %cst_3 = arith.constant dense<0.000000e+00> : vector<2x128xf32>
    %5 = vector.multi_reduction <add>, %4, %cst_3 [1] : vector<2x64x128xf32> to vector<2x128xf32>
    %c0_4 = arith.constant 0 : index
    %c0_5 = arith.constant 0 : index
    %6 = vector.load %arg1[%c0_4, %c0_5] : memref<2x512xbf16, #tpu.memory_space<vmem>>, vector<2x512xbf16>
    %c0_6 = arith.constant 0 : index
    %c0_7 = arith.constant 0 : index
    %7 = vector.load %arg3[%c0_6, %c0_7] : memref<1024x128xbf16, #tpu.memory_space<vmem>>, vector<512x128xbf16>
    %cst_8 = arith.constant dense<0.000000e+00> : vector<2x128xf32>
    %8 = tpu.matmul %6, %7, %cst_8 {dimension_numbers = #tpu.dot_dimension_numbers<[1], [0], [0], [1], [0, 0, 1, 1], [], []>} : vector<2x512xbf16>, vector<512x128xbf16>, vector<2x128xf32> -> vector<2x128xf32>
    %9 = arith.addf %8, %5 : vector<2x128xf32>
    %c0_9 = arith.constant 0 : index
    %c0_10 = arith.constant 0 : index
    %10 = vector.load %arg4[%c0_9, %c0_10] : memref<1x128xf32, #tpu.memory_space<vmem>>, vector<1x128xf32>
    %11 = vector.broadcast %10 : vector<1x128xf32> to vector<2x128xf32>
    %12 = arith.addf %9, %11 : vector<2x128xf32>
    %cst_11 = arith.constant dense<0xFF800000> : vector<2xf32>
    %13 = vector.multi_reduction <maximumf>, %12, %cst_11 [1] : vector<2x128xf32> to vector<2xf32>
    %14 = vector.shape_cast %13 : vector<2xf32> to vector<2x1xf32>
    %15 = vector.broadcast %14 : vector<2x1xf32> to vector<2x128xf32>
    %16 = arith.subf %12, %15 : vector<2x128xf32>
    %17 = math.exp %16 : vector<2x128xf32>
    %cst_12 = arith.constant dense<0.000000e+00> : vector<2xf32>
    %18 = vector.multi_reduction <add>, %17, %cst_12 [1] : vector<2x128xf32> to vector<2xf32>
    %19 = vector.shape_cast %18 : vector<2xf32> to vector<2x1xf32>
    %20 = tpu.reciprocal %19 {approx = true} : vector<2x1xf32> -> vector<2x1xf32>
    %21 = arith.mulf %19, %20 : vector<2x1xf32>
    %cst_13 = arith.constant 2.000000e+00 : f32
    %22 = vector.broadcast %cst_13 : f32 to vector<2x1xf32>
    %23 = arith.subf %22, %21 : vector<2x1xf32>
    %24 = arith.mulf %20, %23 : vector<2x1xf32>
    %25 = vector.broadcast %24 : vector<2x1xf32> to vector<2x128xf32>
    %26 = arith.mulf %17, %25 : vector<2x128xf32>
    %c0_14 = arith.constant 0 : index
    %c0_15 = arith.constant 0 : index
    %27 = vector.load %arg5[%c0_14, %c0_15] : memref<2x128xf32, #tpu.memory_space<vmem>>, vector<2x128xf32>
    tpu.vector_store %arg5[%c0_14, %c0_15], %26 {strides = array<i32>} : memref<2x128xf32, #tpu.memory_space<vmem>>, vector<2x128xf32>,
    return
  }
  func.func @transform_0(%arg0: i32) -> (i32, i32) {
    %c0_i32 = arith.constant 0 : i32
    %c0_i32_0 = arith.constant 0 : i32
    return %arg0, %c0_i32 : i32, i32
  }
  func.func @transform_1(%arg0: i32) -> (i32, i32, i32) {
    %c0_i32 = arith.constant 0 : i32
    %c0_i32_0 = arith.constant 0 : i32
    %c0_i32_1 = arith.constant 0 : i32
    return %arg0, %c0_i32, %c0_i32_0 : i32, i32, i32
  }
  func.func @transform_2(%arg0: i32) -> (i32, i32) {
    %c0_i32 = arith.constant 0 : i32
    %c0_i32_0 = arith.constant 0 : i32
    %c0_i32_1 = arith.constant 0 : i32
    return %c0_i32, %c0_i32_0 : i32, i32
  }
  func.func @transform_3(%arg0: i32) -> (i32, i32) {
    %c0_i32 = arith.constant 0 : i32
    %c0_i32_0 = arith.constant 0 : i32
    %c0_i32_1 = arith.constant 0 : i32
    return %c0_i32, %c0_i32_0 : i32, i32
  }
  func.func @transform_4(%arg0: i32) -> (i32, i32) {
    %c0_i32 = arith.constant 0 : i32
    %c0_i32_0 = arith.constant 0 : i32
    return %arg0, %c0_i32 : i32, i32
  }
}

</mosaic_0001>

<llo_original>
// kernel: dr_grading_subnetwork_forward.1
$region0: #{dr_grading_subnetwork_forward.1}
  #allocation0 [shape = 'u32[]', space=smem, size = 0x4, offset = 0x4, fixed_abs, tag = 'smem constant byte address 0x4 - core index']
  #allocation1 [shape = 'u32[144,128]{1,0:T(1,128)}', space=vmem, size = 0x12000, scoped, tag = 'internal scratch']
  %s0 = inlined_call_operand.vmem [shape: bf16[2,512], index: 0, kind: input, shape index: {}]
  %s1 = inlined_call_operand.vmem [shape: bf16[2,64,512], index: 1, kind: input, shape index: {}]
  %s2 = inlined_call_operand.vmem [shape: bf16[1024,128], index: 2, kind: input, shape index: {}]
  %s3 = inlined_call_operand.vmem [shape: f32[1,128], index: 3, kind: input, shape index: {}]
  %s4 = inlined_call_operand.hbm [shape: f32[2,128], index: 4, kind: output, shape index: {}]
  %s5 = sld [smem:[#allocation0]]
  $region26: #{dr_grading_subnetwork_forward.1} parent=0
    _
  %s7 = ssub.s32 1, %s5
  %s8 = scalar_select 0, %s7, %s5
  $region1: #{dr_grading_subnetwork_forward.1} parent=0
    #allocation2 [shape = 'u8[1024]{0}', space=vmem, size = 0x400, scoped, tag = 'output window, operand 0, single buffered']
    #allocation3 [shape = 's32[1]{0}', space=sflag, size = 0x4, scoped, tag = 'scoped memory for dr_grading_subnetwork_forward.1']
    %9 = vsyncpa [#allocation3], 0
    // Predicated region
    $region2: #{dr_grading_subnetwork_forward.1} parent=1 // pred_check
      _
    $region3: #{dr_grading_subnetwork_forward.1} parent=1 // pred_check_branch
      %11 = sbr.rel (0) target = $region5
    $region4: #{dr_grading_subnetwork_forward.1} parent=1 // pred_region
      _
    $region5: #{dr_grading_subnetwork_forward.1} parent=1 // pred_fallthru
      _
    // Predicated region
    $region6: #{dr_grading_subnetwork_forward.1} parent=1 // pred_check
      _
    $region7: #{dr_grading_subnetwork_forward.1} parent=1 // pred_check_branch
      %13 = sbr.rel (0) target = $region9
    $region8: #{dr_grading_subnetwork_forward.1} parent=1 // pred_region
      _
    $region9: #{dr_grading_subnetwork_forward.1} parent=1 // pred_fallthru
      _
    // Predicated region
    $region10: #{dr_grading_subnetwork_forward.1} parent=1 // pred_check
      _
    $region11: #{dr_grading_subnetwork_forward.1} parent=1 // pred_check_branch
      %15 = sbr.rel (0) target = $region13
    $region12: #{dr_grading_subnetwork_forward.1} parent=1 // pred_region
      _
    $region13: #{dr_grading_subnetwork_forward.1} parent=1 // pred_fallthru
      _
    // Predicated region
    $region14: #{dr_grading_subnetwork_forward.1} parent=1 // pred_check
      _
    $region15: #{dr_grading_subnetwork_forward.1} parent=1 // pred_check_branch
      %17 = sbr.rel (0) target = $region17
    $region16: #{dr_grading_subnetwork_forward.1} parent=1 // pred_region
      _
    $region17: #{dr_grading_subnetwork_forward.1} parent=1 // pred_fallthru
      _
    %v19 = vld [vmem:[%s1] sm:$0xff]
    %v20 = vld [vmem:[%s1 + $0x8] sm:$0xff]
    %v21 = vld [vmem:[%s1 + $0x10] sm:$0xff]
    %v22 = vld [vmem:[%s1 + $0x18] sm:$0xff]
    %v23 = vld [vmem:[%s1 + $0x20] sm:$0xff]
    %v24 = vld [vmem:[%s1 + $0x28] sm:$0xff]
    %v25 = vld [vmem:[%s1 + $0x30] sm:$0xff]
    %v26 = vld [vmem:[%s1 + $0x38] sm:$0xff]
    %v27 = vld [vmem:[%s1 + $0x40] sm:$0xff]
    %v28 = vld [vmem:[%s1 + $0x48] sm:$0xff]
    %v29 = vld [vmem:[%s1 + $0x50] sm:$0xff]
    %v30 = vld [vmem:[%s1 + $0x58] sm:$0xff]
    %v31 = vld [vmem:[%s1 + $0x60] sm:$0xff]
    %v32 = vld [vmem:[%s1 + $0x68] sm:$0xff]
    %v33 = vld [vmem:[%s1 + $0x70] sm:$0xff]
    %v34 = vld [vmem:[%s1 + $0x78] sm:$0xff]
    %v35 = vld [vmem:[%s1 + $0x80] sm:$0xff]
    %v36 = vld [vmem:[%s1 + $0x88] sm:$0xff]
    %v37 = vld [vmem:[%s1 + $0x90] sm:$0xff]
    %v38 = vld [vmem:[%s1 + $0x98] sm:$0xff]
    %v39 = vld [vmem:[%s1 + $0xa0] sm:$0xff]
    %v40 = vld [vmem:[%s1 + $0xa8] sm:$0xff]
    %v41 = vld [vmem:[%s1 + $0xb0] sm:$0xff]
    %v42 = vld [vmem:[%s1 + $0xb8] sm:$0xff]
    %v43 = vld [vmem:[%s1 + $0xc0] sm:$0xff]
    %v44 = vld [vmem:[%s1 + $0xc8] sm:$0xff]
    %v45 = vld [vmem:[%s1 + $0xd0] sm:$0xff]
    %v46 = vld [vmem:[%s1 + $0xd8] sm:$0xff]
    %v47 = vld [vmem:[%s1 + $0xe0] sm:$0xff]
    %v48 = vld [vmem:[%s1 + $0xe8] sm:$0xff]
    %v49 = vld [vmem:[%s1 + $0xf0] sm:$0xff]
    %v50 = vld [vmem:[%s1 + $0xf8] sm:$0xff]
    %v51 = vld [vmem:[%s2 + $0x100] sm:$0xf]
    %v52 = vld [vmem:[%s2 + $0x104] sm:$0xf]
    %v53 = vld [vmem:[%s2 + $0x108] sm:$0xf]
    %v54 = vld [vmem:[%s2 + $0x10c] sm:$0xf]
    %v55 = vld [vmem:[%s2 + $0x110] sm:$0xf]
    %v56 = vld [vmem:[%s2 + $0x114] sm:$0xf]
    %v57 = vld [vmem:[%s2 + $0x118] sm:$0xf]
    %v58 = vld [vmem:[%s2 + $0x11c] sm:$0xf]
    %v59 = vld [vmem:[%s2 + $0x120] sm:$0xf]
    %v60 = vld [vmem:[%s2 + $0x124] sm:$0xf]
    %v61 = vld [vmem:[%s2 + $0x128] sm:$0xf]
    %v62 = vld [vmem:[%s2 + $0x12c] sm:$0xf]
    %v63 = vld [vmem:[%s2 + $0x130] sm:$0xf]
    %v64 = vld [vmem:[%s2 + $0x134] sm:$0xf]
    %v65 = vld [vmem:[%s2 + $0x138] sm:$0xf]
    %v66 = vld [vmem:[%s2 + $0x13c] sm:$0xf]
    %v67 = vld [vmem:[%s2 + $0x140] sm:$0xf]
    %v68 = vld [vmem:[%s2 + $0x144] sm:$0xf]
    %v69 = vld [vmem:[%s2 + $0x148] sm:$0xf]
    %v70 = vld [vmem:[%s2 + $0x14c] sm:$0xf]
    %v71 = vld [vmem:[%s2 + $0x150] sm:$0xf]
    %v72 = vld [vmem:[%s2 + $0x154] sm:$0xf]
    %v73 = vld [vmem:[%s2 + $0x158] sm:$0xf]
    %v74 = vld [vmem:[%s2 + $0x15c] sm:$0xf]
    %v75 = vld [vmem:[%s2 + $0x160] sm:$0xf]
    %v76 = vld [vmem:[%s2 + $0x164] sm:$0xf]
    %v77 = vld [vmem:[%s2 + $0x168] sm:$0xf]
    %v78 = vld [vmem:[%s2 + $0x16c] sm:$0xf]
    %v79 = vld [vmem:[%s2 + $0x170] sm:$0xf]
    %v80 = vld [vmem:[%s2 + $0x174] sm:$0xf]
    %v81 = vld [vmem:[%s2 + $0x178] sm:$0xf]
    %v82 = vld [vmem:[%s2 + $0x17c] sm:$0xf]
    %v83 = vld [vmem:[%s2 + $0x180] sm:$0xf]
    %v84 = vld [vmem:[%s2 + $0x184] sm:$0xf]
    %v85 = vld [vmem:[%s2 + $0x188] sm:$0xf]
    %v86 = vld [vmem:[%s2 + $0x18c] sm:$0xf]
    %v87 = vld [vmem:[%s2 + $0x190] sm:$0xf]
    %v88 = vld [vmem:[%s2 + $0x194] sm:$0xf]
    %v89 = vld [vmem:[%s2 + $0x198] sm:$0xf]
    %v90 = vld [vmem:[%s2 + $0x19c] sm:$0xf]
    %v91 = vld [vmem:[%s2 + $0x1a0] sm:$0xf]
    %v92 = vld [vmem:[%s2 + $0x1a4] sm:$0xf]
    %v93 = vld [vmem:[%s2 + $0x1a8] sm:$0xf]
    %v94 = vld [vmem:[%s2 + $0x1ac] sm:$0xf]
    %v95 = vld [vmem:[%s2 + $0x1b0] sm:$0xf]
    %v96 = vld [vmem:[%s2 + $0x1b4] sm:$0xf]
    %v97 = vld [vmem:[%s2 + $0x1b8] sm:$0xf]
    %v98 = vld [vmem:[%s2 + $0x1bc] sm:$0xf]
    %v99 = vld [vmem:[%s2 + $0x1c0] sm:$0xf]
    %v100 = vld [vmem:[%s2 + $0x1c4] sm:$0xf]
    %v101 = vld [vmem:[%s2 + $0x1c8] sm:$0xf]
    %v102 = vld [vmem:[%s2 + $0x1cc] sm:$0xf]
    %v103 = vld [vmem:[%s2 + $0x1d0] sm:$0xf]
    %v104 = vld [vmem:[%s2 + $0x1d4] sm:$0xf]
    %v105 = vld [vmem:[%s2 + $0x1d8] sm:$0xf]
    %v106 = vld [vmem:[%s2 + $0x1dc] sm:$0xf]
    %v107 = vld [vmem:[%s2 + $0x1e0] sm:$0xf]
    %v108 = vld [vmem:[%s2 + $0x1e4] sm:$0xf]
    %v109 = vld [vmem:[%s2 + $0x1e8] sm:$0xf]
    %v110 = vld [vmem:[%s2 + $0x1ec] sm:$0xf]
    %v111 = vld [vmem:[%s2 + $0x1f0] sm:$0xf]
    %v112 = vld [vmem:[%s2 + $0x1f4] sm:$0xf]
    %v113 = vld [vmem:[%s2 + $0x1f8] sm:$0xf]
    %v114 = vld [vmem:[%s2 + $0x1fc] sm:$0xf]
    %v147 = vunpack.c.l.b16 %v19
    %v148 = vunpack.c.h.b16 %v19
    %v149 = vunpack.c.l.b16 %v20
    %v150 = vunpack.c.h.b16 %v20
    %v151 = vunpack.c.l.b16 %v21
    %v152 = vunpack.c.h.b16 %v21
    %v153 = vunpack.c.l.b16 %v22
    %v154 = vunpack.c.h.b16 %v22
    %v155 = vunpack.c.l.b16 %v23
    %v156 = vunpack.c.h.b16 %v23
    %v157 = vunpack.c.l.b16 %v24
    %v158 = vunpack.c.h.b16 %v24
    %v159 = vunpack.c.l.b16 %v25
    %v160 = vunpack.c.h.b16 %v25
    %v161 = vunpack.c.l.b16 %v26
    %v162 = vunpack.c.h.b16 %v26
    %v163 = vunpack.c.l.b16 %v27
    %v164 = vunpack.c.h.b16 %v27
    %v165 = vunpack.c.l.b16 %v28
    %v166 = vunpack.c.h.b16 %v28
    %v167 = vunpack.c.l.b16 %v29
    %v168 = vunpack.c.h.b16 %v29
    %v169 = vunpack.c.l.b16 %v30
    %v170 = vunpack.c.h.b16 %v30
    %v171 = vunpack.c.l.b16 %v31
    %v172 = vunpack.c.h.b16 %v31
    %v173 = vunpack.c.l.b16 %v32
    %v174 = vunpack.c.h.b16 %v32
    %v175 = vunpack.c.l.b16 %v33
    %v176 = vunpack.c.h.b16 %v33
    %v177 = vunpack.c.l.b16 %v34
    %v178 = vunpack.c.h.b16 %v34
    %v179 = vunpack.c.l.b16 %v35
    %v180 = vunpack.c.h.b16 %v35
    %v181 = vunpack.c.l.b16 %v36
    %v182 = vunpack.c.h.b16 %v36
    %v183 = vunpack.c.l.b16 %v37
    %v184 = vunpack.c.h.b16 %v37
    %v185 = vunpack.c.l.b16 %v38
    %v186 = vunpack.c.h.b16 %v38
    %v187 = vunpack.c.l.b16 %v39
    %v188 = vunpack.c.h.b16 %v39
    %v189 = vunpack.c.l.b16 %v40
    %v190 = vunpack.c.h.b16 %v40
    %v191 = vunpack.c.l.b16 %v41
    %v192 = vunpack.c.h.b16 %v41
    %v193 = vunpack.c.l.b16 %v42
    %v194 = vunpack.c.h.b16 %v42
    %v195 = vunpack.c.l.b16 %v43
    %v196 = vunpack.c.h.b16 %v43
    %v197 = vunpack.c.l.b16 %v44
    %v198 = vunpack.c.h.b16 %v44
    %v199 = vunpack.c.l.b16 %v45
    %v200 = vunpack.c.h.b16 %v45
    %v201 = vunpack.c.l.b16 %v46
    %v202 = vunpack.c.h.b16 %v46
    %v203 = vunpack.c.l.b16 %v47
    %v204 = vunpack.c.h.b16 %v47
    %v205 = vunpack.c.l.b16 %v48
    %v206 = vunpack.c.h.b16 %v48
    %v207 = vunpack.c.l.b16 %v49
    %v208 = vunpack.c.h.b16 %v49
    %v209 = vunpack.c.l.b16 %v50
    %v210 = vunpack.c.h.b16 %v50
    %v211 = vpack.c.b16 %v151, %v147
    %v212 = vpack.c.b16 %v152, %v148
    %v213 = vpack.c.b16 %v153, %v149
    %v214 = vpack.c.b16 %v154, %v150
    %v215 = vpack.c.b16 %v159, %v155
    %v216 = vpack.c.b16 %v160, %v156
    %v217 = vpack.c.b16 %v161, %v157
    %v218 = vpack.c.b16 %v162, %v158
    %v219 = vpack.c.b16 %v167, %v163
    %v220 = vpack.c.b16 %v168, %v164
    %v221 = vpack.c.b16 %v169, %v165
    %v222 = vpack.c.b16 %v170, %v166
    %v223 = vpack.c.b16 %v175, %v171
    %v224 = vpack.c.b16 %v176, %v172
    %v225 = vpack.c.b16 %v177, %v173
    %v226 = vpack.c.b16 %v178, %v174
    %v227 = vpack.c.b16 %v183, %v179
    %v228 = vpack.c.b16 %v184, %v180
    %v229 = vpack.c.b16 %v185, %v181
    %v230 = vpack.c.b16 %v186, %v182
    %v231 = vpack.c.b16 %v191, %v187
    %v232 = vpack.c.b16 %v192, %v188
    %v233 = vpack.c.b16 %v193, %v189
    %v234 = vpack.c.b16 %v194, %v190
    %v235 = vpack.c.b16 %v199, %v195
    %v236 = vpack.c.b16 %v200, %v196
    %v237 = vpack.c.b16 %v201, %v197
    %v238 = vpack.c.b16 %v202, %v198
    %v239 = vpack.c.b16 %v207, %v203
    %v240 = vpack.c.b16 %v208, %v204
    %v241 = vpack.c.b16 %v209, %v205
    %v242 = vpack.c.b16 %v210, %v206
    %v339 = vunpack.c.l.b16 %v51
    %v340 = vunpack.c.l.b16 %v52
    %v341 = vunpack.c.l.b16 %v53
    %v342 = vunpack.c.l.b16 %v54
    %v343 = vunpack.c.l.b16 %v55
    %v344 = vunpack.c.l.b16 %v56
    %v345 = vunpack.c.l.b16 %v57
    %v346 = vunpack.c.l.b16 %v58
    %v347 = vunpack.c.l.b16 %v59
    %v348 = vunpack.c.l.b16 %v60
    %v349 = vunpack.c.l.b16 %v61
    %v350 = vunpack.c.l.b16 %v62
    %v351 = vunpack.c.l.b16 %v63
    %v352 = vunpack.c.l.b16 %v64
    %v353 = vunpack.c.l.b16 %v65
    %v354 = vunpack.c.l.b16 %v66
    %v355 = vunpack.c.l.b16 %v67
    %v356 = vunpack.c.l.b16 %v68
    %v357 = vunpack.c.l.b16 %v69
    %v358 = vunpack.c.l.b16 %v70
    %v359 = vunpack.c.l.b16 %v71
    %v360 = vunpack.c.l.b16 %v72
    %v361 = vunpack.c.l.b16 %v73
    %v362 = vunpack.c.l.b16 %v74
    %v363 = vunpack.c.l.b16 %v75
    %v364 = vunpack.c.l.b16 %v76
    %v365 = vunpack.c.l.b16 %v77
    %v366 = vunpack.c.l.b16 %v78
    %v367 = vunpack.c.l.b16 %v79
    %v368 = vunpack.c.l.b16 %v80
    %v369 = vunpack.c.l.b16 %v81
    %v370 = vunpack.c.l.b16 %v82
    %v371 = vunpack.c.l.b16 %v83
    %v372 = vunpack.c.l.b16 %v84
    %v373 = vunpack.c.l.b16 %v85
    %v374 = vunpack.c.l.b16 %v86
    %v375 = vunpack.c.l.b16 %v87
    %v376 = vunpack.c.l.b16 %v88
    %v377 = vunpack.c.l.b16 %v89
    %v378 = vunpack.c.l.b16 %v90
    %v379 = vunpack.c.l.b16 %v91
    %v380 = vunpack.c.l.b16 %v92
    %v381 = vunpack.c.l.b16 %v93
    %v382 = vunpack.c.l.b16 %v94
    %v383 = vunpack.c.l.b16 %v95
    %v384 = vunpack.c.l.b16 %v96
    %v385 = vunpack.c.l.b16 %v97
    %v386 = vunpack.c.l.b16 %v98
    %v387 = vunpack.c.l.b16 %v99
    %v388 = vunpack.c.l.b16 %v100
    %v389 = vunpack.c.l.b16 %v101
    %v390 = vunpack.c.l.b16 %v102
    %v391 = vunpack.c.l.b16 %v103
    %v392 = vunpack.c.l.b16 %v104
    %v393 = vunpack.c.l.b16 %v105
    %v394 = vunpack.c.l.b16 %v106
    %v395 = vunpack.c.l.b16 %v107
    %v396 = vunpack.c.l.b16 %v108
    %v397 = vunpack.c.l.b16 %v109
    %v398 = vunpack.c.l.b16 %v110
    %v399 = vunpack.c.l.b16 %v111
    %v400 = vunpack.c.l.b16 %v112
    %v401 = vunpack.c.l.b16 %v113
    %v402 = vunpack.c.l.b16 %v114
    %v403 = vpack.c.b16 %v340, %v339
    %v404 = vpack.c.b16 %v342, %v341
    %v405 = vpack.c.b16 %v344, %v343
    %v406 = vpack.c.b16 %v346, %v345
    %v407 = vpack.c.b16 %v348, %v347
    %v408 = vpack.c.b16 %v350, %v349
    %v409 = vpack.c.b16 %v352, %v351
    %v410 = vpack.c.b16 %v354, %v353
    %v411 = vpack.c.b16 %v356, %v355
    %v412 = vpack.c.b16 %v358, %v357
    %v413 = vpack.c.b16 %v360, %v359
    %v414 = vpack.c.b16 %v362, %v361
    %v415 = vpack.c.b16 %v364, %v363
    %v416 = vpack.c.b16 %v366, %v365
    %v417 = vpack.c.b16 %v368, %v367
    %v418 = vpack.c.b16 %v370, %v369
    %v419 = vpack.c.b16 %v372, %v371
    %v420 = vpack.c.b16 %v374, %v373
    %v421 = vpack.c.b16 %v376, %v375
    %v422 = vpack.c.b16 %v378, %v377
    %v423 = vpack.c.b16 %v380, %v379
    %v424 = vpack.c.b16 %v382, %v381
    %v425 = vpack.c.b16 %v384, %v383
    %v426 = vpack.c.b16 %v386, %v385
    %v427 = vpack.c.b16 %v388, %v387
    %v428 = vpack.c.b16 %v390, %v389
    %v429 = vpack.c.b16 %v392, %v391
    %v430 = vpack.c.b16 %v394, %v393
    %v431 = vpack.c.b16 %v396, %v395
    %v432 = vpack.c.b16 %v398, %v397
    %v433 = vpack.c.b16 %v400, %v399
    %v434 = vpack.c.b16 %v402, %v401
    %467 = vmatprep.subr.bf16.mxu0 0
    %468 = vmatpush1.bf16.msra.mxu0 %v403
    %469 = vmatprep.subr.bf16.mxu0 0
    %470 = vmatpush1.bf16.msra.mxu0 %v404
    %471 = vmatprep.subr.bf16.mxu0 0
    %472 = vmatpush1.bf16.msra.mxu0 %v405
    %473 = vmatprep.subr.bf16.mxu0 0
    %474 = vmatpush1.bf16.msra.mxu0 %v406
    %475 = vmatprep.subr.bf16.mxu0 0
    %476 = vmatpush1.bf16.msra.mxu0 %v407
    %477 = vmatprep.subr.bf16.mxu0 0
    %478 = vmatpush1.bf16.msra.mxu0 %v408
    %479 = vmatprep.subr.bf16.mxu0 0
    %480 = vmatpush1.bf16.msra.mxu0 %v409
    %481 = vmatprep.subr.bf16.mxu0 0
    %482 = vmatpush1.bf16.msra.mxu0 %v410
    %483 = vmatprep.subr.bf16.mxu0 0
    %484 = vmatpush1.bf16.msra.mxu0 %v411
    %485 = vmatprep.subr.bf16.mxu0 0
    %486 = vmatpush1.bf16.msra.mxu0 %v412
    %487 = vmatprep.subr.bf16.mxu0 0
    %488 = vmatpush1.bf16.msra.mxu0 %v413
    %489 = vmatprep.subr.bf16.mxu0 0
    %490 = vmatpush1.bf16.msra.mxu0 %v414
    %491 = vmatprep.subr.bf16.mxu0 0
    %492 = vmatpush1.bf16.msra.mxu0 %v415
    %493 = vmatprep.subr.bf16.mxu0 0
    %494 = vmatpush1.bf16.msra.mxu0 %v416
    %495 = vmatprep.subr.bf16.mxu0 0
    %496 = vmatpush1.bf16.msra.mxu0 %v417
    %497 = vmatprep.subr.bf16.mxu0 0
    %498 = vmatpush1.bf16.msra.mxu0 %v418
    %499 = vmatprep.mubr.bf16.mxu0 %v212
    %500 = vmatmul.mubr.bf16.gmra.mrb[0].mxu0 %v211
    %v501 = vpop.f32.mrb[0].mxu0
    %v502 = vadd.f32 0.0, %v501
    %v503 = vpop.f32.mrb[0].mxu0
    %v504 = vpop.f32.mrb[0].mxu0
    %v505 = vadd.f32 0.0, %v504
    %v506 = vpop.f32.mrb[0].mxu0
    %507 = vmatprep.mubr.bf16.mxu0 %v216
    %508 = vmatmul.mubr.bf16.gmra.mrb[0].mxu0 %v215
    %v509 = vpop.f32.mrb[0].mxu0
    %v510 = vadd.f32 0.0, %v509
    %v511 = vpop.f32.mrb[0].mxu0
    %v512 = vpop.f32.mrb[0].mxu0
    %v513 = vadd.f32 0.0, %v512
    %v514 = vpop.f32.mrb[0].mxu0
    %515 = vmatprep.mubr.bf16.mxu0 %v220
    %516 = vmatmul.mubr.bf16.gmra.mrb[0].mxu0 %v219
    %v517 = vpop.f32.mrb[0].mxu0
    %v518 = vadd.f32 0.0, %v517
    %v519 = vpop.f32.mrb[0].mxu0
    %v520 = vpop.f32.mrb[0].mxu0
    %v521 = vadd.f32 0.0, %v520
    %v522 = vpop.f32.mrb[0].mxu0
    %523 = vmatprep.mubr.bf16.mxu0 %v224
    %524 = vmatmul.mubr.bf16.gmra.mrb[0].mxu0 %v223
    %v525 = vpop.f32.mrb[0].mxu0
    %v526 = vadd.f32 0.0, %v525
    %v527 = vpop.f32.mrb[0].mxu0
    %v528 = vpop.f32.mrb[0].mxu0
    %v529 = vadd.f32 0.0, %v528
    %v530 = vpop.f32.mrb[0].mxu0
    %531 = vmatprep.mubr.bf16.mxu0 %v228
    %532 = vmatmul.mubr.bf16.gmra.mrb[0].mxu0 %v227
    %v533 = vpop.f32.mrb[0].mxu0
    %v534 = vadd.f32 0.0, %v533
    %v535 = vpop.f32.mrb[0].mxu0
    %v536 = vpop.f32.mrb[0].mxu0
    %v537 = vadd.f32 0.0, %v536
    %v538 = vpop.f32.mrb[0].mxu0
    %539 = vmatprep.mubr.bf16.mxu0 %v232
    %540 = vmatmul.mubr.bf16.gmra.mrb[0].mxu0 %v231
    %v541 = vpop.f32.mrb[0].mxu0
    %v542 = vadd.f32 0.0, %v541
    %v543 = vpop.f32.mrb[0].mxu0
    %v544 = vpop.f32.mrb[0].mxu0
    %v545 = vadd.f32 0.0, %v544
    %v546 = vpop.f32.mrb[0].mxu0
    %547 = vmatprep.mubr.bf16.mxu0 %v236
    %548 = vmatmul.mubr.bf16.gmra.mrb[0].mxu0 %v235
    %v549 = vpop.f32.mrb[0].mxu0
    %v550 = vadd.f32 0.0, %v549
    %v551 = vpop.f32.mrb[0].mxu0
    %v552 = vpop.f32.mrb[0].mxu0
    %v553 = vadd.f32 0.0, %v552
    %v554 = vpop.f32.mrb[0].mxu0
    %555 = vmatprep.mubr.bf16.mxu0 %v240
    %556 = vmatmul.mubr.bf16.gmra.mrb[0].mxu0 %v239
    %v557 = vpop.f32.mrb[0].mxu0
    %v558 = vadd.f32 0.0, %v557
    %v559 = vpop.f32.mrb[0].mxu0
    %v560 = vpop.f32.mrb[0].mxu0
    %v561 = vadd.f32 0.0, %v560
    %v562 = vpop.f32.mrb[0].mxu0
    %563 = vdwg.mxu0
    %564 = vmatprep.subr.bf16.mxu0 0
    %565 = vmatpush1.bf16.msra.mxu0 %v419
    %566 = vmatprep.subr.bf16.mxu0 0
    %567 = vmatpush1.bf16.msra.mxu0 %v420
    %568 = vmatprep.subr.bf16.mxu0 0
    %569 = vmatpush1.bf16.msra.mxu0 %v421
    %570 = vmatprep.subr.bf16.mxu0 0
    %571 = vmatpush1.bf16.msra.mxu0 %v422
    %572 = vmatprep.subr.bf16.mxu0 0
    %573 = vmatpush1.bf16.msra.mxu0 %v423
    %574 = vmatprep.subr.bf16.mxu0 0
    %575 = vmatpush1.bf16.msra.mxu0 %v424
    %576 = vmatprep.subr.bf16.mxu0 0
    %577 = vmatpush1.bf16.msra.mxu0 %v425
    %578 = vmatprep.subr.bf16.mxu0 0
    %579 = vmatpush1.bf16.msra.mxu0 %v426
    %580 = vmatprep.subr.bf16.mxu0 0
    %581 = vmatpush1.bf16.msra.mxu0 %v427
    %582 = vmatprep.subr.bf16.mxu0 0
    %583 = vmatpush1.bf16.msra.mxu0 %v428
    %584 = vmatprep.subr.bf16.mxu0 0
    %585 = vmatpush1.bf16.msra.mxu0 %v429
    %586 = vmatprep.subr.bf16.mxu0 0
    %587 = vmatpush1.bf16.msra.mxu0 %v430
    %588 = vmatprep.subr.bf16.mxu0 0
    %589 = vmatpush1.bf16.msra.mxu0 %v431
    %590 = vmatprep.subr.bf16.mxu0 0
    %591 = vmatpush1.bf16.msra.mxu0 %v432
    %592 = vmatprep.subr.bf16.mxu0 0
    %593 = vmatpush1.bf16.msra.mxu0 %v433
    %594 = vmatprep.subr.bf16.mxu0 0
    %595 = vmatpush1.bf16.msra.mxu0 %v434
    %596 = vmatprep.mubr.bf16.mxu0 %v214
    %597 = vmatmul.mubr.bf16.gmra.mrb[0].mxu0 %v213
    %v598 = vpop.f32.mrb[0].mxu0
    %v599 = vadd.f32 %v502, %v598
    %v600 = vpop.f32.mrb[0].mxu0
    %v601 = vpop.f32.mrb[0].mxu0
    %v602 = vadd.f32 %v505, %v601
    %v603 = vpop.f32.mrb[0].mxu0
    %604 = vmatprep.mubr.bf16.mxu0 %v218
    %605 = vmatmul.mubr.bf16.gmra.mrb[0].mxu0 %v217
    %v606 = vpop.f32.mrb[0].mxu0
    %v607 = vadd.f32 %v510, %v606
    %v608 = vpop.f32.mrb[0].mxu0
    %v609 = vpop.f32.mrb[0].mxu0
    %v610 = vadd.f32 %v513, %v609
    %v611 = vpop.f32.mrb[0].mxu0
    %612 = vmatprep.mubr.bf16.mxu0 %v222
    %613 = vmatmul.mubr.bf16.gmra.mrb[0].mxu0 %v221
    %v614 = vpop.f32.mrb[0].mxu0
    %v615 = vadd.f32 %v518, %v614
    %v616 = vpop.f32.mrb[0].mxu0
    %v617 = vpop.f32.mrb[0].mxu0
    %v618 = vadd.f32 %v521, %v617
    %v619 = vpop.f32.mrb[0].mxu0
    %620 = vmatprep.mubr.bf16.mxu0 %v226
    %621 = vmatmul.mubr.bf16.gmra.mrb[0].mxu0 %v225
    %v622 = vpop.f32.mrb[0].mxu0
    %v623 = vadd.f32 %v526, %v622
    %v624 = vpop.f32.mrb[0].mxu0
    %v625 = vpop.f32.mrb[0].mxu0
    %v626 = vadd.f32 %v529, %v625
    %v627 = vpop.f32.mrb[0].mxu0
    %628 = vmatprep.mubr.bf16.mxu0 %v230
    %629 = vmatmul.mubr.bf16.gmra.mrb[0].mxu0 %v229
    %v630 = vpop.f32.mrb[0].mxu0
    %v631 = vadd.f32 %v534, %v630
    %v632 = vpop.f32.mrb[0].mxu0
    %v633 = vpop.f32.mrb[0].mxu0
    %v634 = vadd.f32 %v537, %v633
    %v635 = vpop.f32.mrb[0].mxu0
    %636 = vmatprep.mubr.bf16.mxu0 %v234
    %637 = vmatmul.mubr.bf16.gmra.mrb[0].mxu0 %v233
    %v638 = vpop.f32.mrb[0].mxu0
    %v639 = vadd.f32 %v542, %v638
    %v640 = vpop.f32.mrb[0].mxu0
    %v641 = vpop.f32.mrb[0].mxu0
    %v642 = vadd.f32 %v545, %v641
    %v643 = vpop.f32.mrb[0].mxu0
    %644 = vmatprep.mubr.bf16.mxu0 %v238
    %645 = vmatmul.mubr.bf16.gmra.mrb[0].mxu0 %v237
    %v646 = vpop.f32.mrb[0].mxu0
    %v647 = vadd.f32 %v550, %v646
    %v648 = vpop.f32.mrb[0].mxu0
    %v649 = vpop.f32.mrb[0].mxu0
    %v650 = vadd.f32 %v553, %v649
    %v651 = vpop.f32.mrb[0].mxu0
    %652 = vmatprep.mubr.bf16.mxu0 %v242
    %653 = vmatmul.mubr.bf16.gmra.mrb[0].mxu0 %v241
    %v654 = vpop.f32.mrb[0].mxu0
    %v655 = vadd.f32 %v558, %v654
    %v656 = vpop.f32.mrb[0].mxu0
    %v657 = vpop.f32.mrb[0].mxu0
    %v658 = vadd.f32 %v561, %v657
    %v659 = vpop.f32.mrb[0].mxu0
    %660 = vdwg.mxu0
    %v661 = vadd.f32 %v599, %v602
    %v662 = vadd.f32 %v661, %v607
    %v663 = vadd.f32 %v662, %v610
    %v664 = vadd.f32 %v663, %v615
    %v665 = vadd.f32 %v664, %v618
    %v666 = vadd.f32 %v665, %v623
    %v667 = vadd.f32 %v666, %v626
    %v668 = vrot.slane %v667, 4
    %v669 = vadd.f32 %v667, %v668
    %v670 = vrot.slane %v669, 2
    %v671 = vadd.f32 %v669, %v670
    %v672 = vrot.slane %v671, 1
    %v673 = vadd.f32 %v671, %v672
    %v674 = vadd.f32 %v631, %v634
    %v675 = vadd.f32 %v674, %v639
    %v676 = vadd.f32 %v675, %v642
    %v677 = vadd.f32 %v676, %v647
    %v678 = vadd.f32 %v677, %v650
    %v679 = vadd.f32 %v678, %v655
    %v680 = vadd.f32 %v679, %v658
    %v681 = vrot.slane %v680, 4
    %v682 = vadd.f32 %v680, %v681
    %v683 = vrot.slane %v682, 2
    %v684 = vadd.f32 %v682, %v683
    %v685 = vrot.slane %v684, 1
    %v686 = vadd.f32 %v684, %v685
    %v687 = vld [vmem:[%s0] sm:$0xf]
    %v688 = vld [vmem:[%s2] sm:$0xf]
    %v689 = vld [vmem:[%s2 + $0x4] sm:$0xf]
    %v690 = vld [vmem:[%s2 + $0x8] sm:$0xf]
    %v691 = vld [vmem:[%s2 + $0xc] sm:$0xf]
    %v692 = vld [vmem:[%s2 + $0x10] sm:$0xf]
    %v693 = vld [vmem:[%s2 + $0x14] sm:$0xf]
    %v694 = vld [vmem:[%s2 + $0x18] sm:$0xf]
    %v695 = vld [vmem:[%s2 + $0x1c] sm:$0xf]
    %v696 = vld [vmem:[%s2 + $0x20] sm:$0xf]
    %v697 = vld [vmem:[%s2 + $0x24] sm:$0xf]
    %v698 = vld [vmem:[%s2 + $0x28] sm:$0xf]
    %v699 = vld [vmem:[%s2 + $0x2c] sm:$0xf]
    %v700 = vld [vmem:[%s2 + $0x30] sm:$0xf]
    %v701 = vld [vmem:[%s2 + $0x34] sm:$0xf]
    %v702 = vld [vmem:[%s2 + $0x38] sm:$0xf]
    %v703 = vld [vmem:[%s2 + $0x3c] sm:$0xf]
    %v704 = vld [vmem:[%s2 + $0x40] sm:$0xf]
    %v705 = vld [vmem:[%s2 + $0x44] sm:$0xf]
    %v706 = vld [vmem:[%s2 + $0x48] sm:$0xf]
    %v707 = vld [vmem:[%s2 + $0x4c] sm:$0xf]
    %v708 = vld [vmem:[%s2 + $0x50] sm:$0xf]
    %v709 = vld [vmem:[%s2 + $0x54] sm:$0xf]
    %v710 = vld [vmem:[%s2 + $0x58] sm:$0xf]
    %v711 = vld [vmem:[%s2 + $0x5c] sm:$0xf]
    %v712 = vld [vmem:[%s2 + $0x60] sm:$0xf]
    %v713 = vld [vmem:[%s2 + $0x64] sm:$0xf]
    %v714 = vld [vmem:[%s2 + $0x68] sm:$0xf]
    %v715 = vld [vmem:[%s2 + $0x6c] sm:$0xf]
    %v716 = vld [vmem:[%s2 + $0x70] sm:$0xf]
    %v717 = vld [vmem:[%s2 + $0x74] sm:$0xf]
    %v718 = vld [vmem:[%s2 + $0x78] sm:$0xf]
    %v719 = vld [vmem:[%s2 + $0x7c] sm:$0xf]
    %v720 = vld [vmem:[%s2 + $0x80] sm:$0xf]
    %v721 = vld [vmem:[%s2 + $0x84] sm:$0xf]
    %v722 = vld [vmem:[%s2 + $0x88] sm:$0xf]
    %v723 = vld [vmem:[%s2 + $0x8c] sm:$0xf]
    %v724 = vld [vmem:[%s2 + $0x90] sm:$0xf]
    %v725 = vld [vmem:[%s2 + $0x94] sm:$0xf]
    %v726 = vld [vmem:[%s2 + $0x98] sm:$0xf]
    %v727 = vld [vmem:[%s2 + $0x9c] sm:$0xf]
    %v728 = vld [vmem:[%s2 + $0xa0] sm:$0xf]
    %v729 = vld [vmem:[%s2 + $0xa4] sm:$0xf]
    %v730 = vld [vmem:[%s2 + $0xa8] sm:$0xf]
    %v731 = vld [vmem:[%s2 + $0xac] sm:$0xf]
    %v732 = vld [vmem:[%s2 + $0xb0] sm:$0xf]
    %v733 = vld [vmem:[%s2 + $0xb4] sm:$0xf]
    %v734 = vld [vmem:[%s2 + $0xb8] sm:$0xf]
    %v735 = vld [vmem:[%s2 + $0xbc] sm:$0xf]
    %v736 = vld [vmem:[%s2 + $0xc0] sm:$0xf]
    %v737 = vld [vmem:[%s2 + $0xc4] sm:$0xf]
    %v738 = vld [vmem:[%s2 + $0xc8] sm:$0xf]
    %v739 = vld [vmem:[%s2 + $0xcc] sm:$0xf]
    %v740 = vld [vmem:[%s2 + $0xd0] sm:$0xf]
    %v741 = vld [vmem:[%s2 + $0xd4] sm:$0xf]
    %v742 = vld [vmem:[%s2 + $0xd8] sm:$0xf]
    %v743 = vld [vmem:[%s2 + $0xdc] sm:$0xf]
    %v744 = vld [vmem:[%s2 + $0xe0] sm:$0xf]
    %v745 = vld [vmem:[%s2 + $0xe4] sm:$0xf]
    %v746 = vld [vmem:[%s2 + $0xe8] sm:$0xf]
    %v747 = vld [vmem:[%s2 + $0xec] sm:$0xf]
    %v748 = vld [vmem:[%s2 + $0xf0] sm:$0xf]
    %v749 = vld [vmem:[%s2 + $0xf4] sm:$0xf]
    %v750 = vld [vmem:[%s2 + $0xf8] sm:$0xf]
    %v751 = vld [vmem:[%s2 + $0xfc] sm:$0xf]
    %v754 = vunpack.c.l.s4 1966171168
    %v755 = vunpack.c.0.s8 %v754
    %v756 = vlaneseq
    %v757 = vshrl.u32 %v756, 7
    %v758 = vsub.s32 %v755, %v757
    %v759 = vrot.slane %v687, %v758
    %v760 = vcombine.high %v759, %v759
    %v762 = vunpack.c.l.s4 1966171168
    %v763 = vunpack.c.0.s8 %v762
    %v764 = vlaneseq
    %v765 = vshrl.u32 %v764, 7
    %v766 = vsub.s32 %v763, %v765
    %v767 = vrot.slane %v759, %v766
    %v769 = vunpack.c.l.s4 1966171168
    %v770 = vunpack.c.0.s8 %v769
    %v771 = vlaneseq
    %v772 = vshrl.u32 %v771, 7
    %v773 = vsub.s32 %v770, %v772
    %v774 = vrot.slane %v760, %v773
    %v775 = vcombine.high %v767, %v767
    %v776 = vcombine.high %v774, %v774
    %v845 = vunpack.c.l.b16 %v688
    %v846 = vunpack.c.l.b16 %v689
    %v847 = vunpack.c.l.b16 %v690
    %v848 = vunpack.c.l.b16 %v691
    %v849 = vunpack.c.l.b16 %v692
    %v850 = vunpack.c.l.b16 %v693
    %v851 = vunpack.c.l.b16 %v694
    %v852 = vunpack.c.l.b16 %v695
    %v853 = vunpack.c.l.b16 %v696
    %v854 = vunpack.c.l.b16 %v697
    %v855 = vunpack.c.l.b16 %v698
    %v856 = vunpack.c.l.b16 %v699
    %v857 = vunpack.c.l.b16 %v700
    %v858 = vunpack.c.l.b16 %v701
    %v859 = vunpack.c.l.b16 %v702
    %v860 = vunpack.c.l.b16 %v703
    %v861 = vunpack.c.l.b16 %v704
    %v862 = vunpack.c.l.b16 %v705
    %v863 = vunpack.c.l.b16 %v706
    %v864 = vunpack.c.l.b16 %v707
    %v865 = vunpack.c.l.b16 %v708
    %v866 = vunpack.c.l.b16 %v709
    %v867 = vunpack.c.l.b16 %v710
    %v868 = vunpack.c.l.b16 %v711
    %v869 = vunpack.c.l.b16 %v712
    %v870 = vunpack.c.l.b16 %v713
    %v871 = vunpack.c.l.b16 %v714
    %v872 = vunpack.c.l.b16 %v715
    %v873 = vunpack.c.l.b16 %v716
    %v874 = vunpack.c.l.b16 %v717
    %v875 = vunpack.c.l.b16 %v718
    %v876 = vunpack.c.l.b16 %v719
    %v877 = vunpack.c.l.b16 %v720
    %v878 = vunpack.c.l.b16 %v721
    %v879 = vunpack.c.l.b16 %v722
    %v880 = vunpack.c.l.b16 %v723
    %v881 = vunpack.c.l.b16 %v724
    %v882 = vunpack.c.l.b16 %v725
    %v883 = vunpack.c.l.b16 %v726
    %v884 = vunpack.c.l.b16 %v727
    %v885 = vunpack.c.l.b16 %v728
    %v886 = vunpack.c.l.b16 %v729
    %v887 = vunpack.c.l.b16 %v730
    %v888 = vunpack.c.l.b16 %v731
    %v889 = vunpack.c.l.b16 %v732
    %v890 = vunpack.c.l.b16 %v733
    %v891 = vunpack.c.l.b16 %v734
    %v892 = vunpack.c.l.b16 %v735
    %v893 = vunpack.c.l.b16 %v736
    %v894 = vunpack.c.l.b16 %v737
    %v895 = vunpack.c.l.b16 %v738
    %v896 = vunpack.c.l.b16 %v739
    %v897 = vunpack.c.l.b16 %v740
    %v898 = vunpack.c.l.b16 %v741
    %v899 = vunpack.c.l.b16 %v742
    %v900 = vunpack.c.l.b16 %v743
    %v901 = vunpack.c.l.b16 %v744
    %v902 = vunpack.c.l.b16 %v745
    %v903 = vunpack.c.l.b16 %v746
    %v904 = vunpack.c.l.b16 %v747
    %v905 = vunpack.c.l.b16 %v748
    %v906 = vunpack.c.l.b16 %v749
    %v907 = vunpack.c.l.b16 %v750
    %v908 = vunpack.c.l.b16 %v751
    %v909 = vpack.c.b16 %v846, %v845
    %v910 = vpack.c.b16 %v848, %v847
    %v911 = vpack.c.b16 %v850, %v849
    %v912 = vpack.c.b16 %v852, %v851
    %v913 = vpack.c.b16 %v854, %v853
    %v914 = vpack.c.b16 %v856, %v855
    %v915 = vpack.c.b16 %v858, %v857
    %v916 = vpack.c.b16 %v860, %v859
    %v917 = vpack.c.b16 %v862, %v861
    %v918 = vpack.c.b16 %v864, %v863
    %v919 = vpack.c.b16 %v866, %v865
    %v920 = vpack.c.b16 %v868, %v867
    %v921 = vpack.c.b16 %v870, %v869
    %v922 = vpack.c.b16 %v872, %v871
    %v923 = vpack.c.b16 %v874, %v873
    %v924 = vpack.c.b16 %v876, %v875
    %v925 = vpack.c.b16 %v878, %v877
    %v926 = vpack.c.b16 %v880, %v879
    %v927 = vpack.c.b16 %v882, %v881
    %v928 = vpack.c.b16 %v884, %v883
    %v929 = vpack.c.b16 %v886, %v885
    %v930 = vpack.c.b16 %v888, %v887
    %v931 = vpack.c.b16 %v890, %v889
    %v932 = vpack.c.b16 %v892, %v891
    %v933 = vpack.c.b16 %v894, %v893
    %v934 = vpack.c.b16 %v896, %v895
    %v935 = vpack.c.b16 %v898, %v897
    %v936 = vpack.c.b16 %v900, %v899
    %v937 = vpack.c.b16 %v902, %v901
    %v938 = vpack.c.b16 %v904, %v903
    %v939 = vpack.c.b16 %v906, %v905
    %v940 = vpack.c.b16 %v908, %v907
    %vm975 = vcmask 1041409
    %v976 = vsel %vm975, %v686, %v673
    %978 = vmatprep.subr.bf16.mxu0 0
    %979 = vmatpush1.bf16.msra.mxu0 %v909
    %980 = vmatprep.subr.bf16.mxu0 0
    %981 = vmatpush1.bf16.msra.mxu0 %v910
    %982 = vmatprep.subr.bf16.mxu0 0
    %983 = vmatpush1.bf16.msra.mxu0 %v911
    %984 = vmatprep.subr.bf16.mxu0 0
    %985 = vmatpush1.bf16.msra.mxu0 %v912
    %986 = vmatprep.subr.bf16.mxu0 0
    %987 = vmatpush1.bf16.msra.mxu0 %v913
    %988 = vmatprep.subr.bf16.mxu0 0
    %989 = vmatpush1.bf16.msra.mxu0 %v914
    %990 = vmatprep.subr.bf16.mxu0 0
    %991 = vmatpush1.bf16.msra.mxu0 %v915
    %992 = vmatprep.subr.bf16.mxu0 0
    %993 = vmatpush1.bf16.msra.mxu0 %v916
    %994 = vmatprep.subr.bf16.mxu0 0
    %995 = vmatpush1.bf16.msra.mxu0 %v917
    %996 = vmatprep.subr.bf16.mxu0 0
    %997 = vmatpush1.bf16.msra.mxu0 %v918
    %998 = vmatprep.subr.bf16.mxu0 0
    %999 = vmatpush1.bf16.msra.mxu0 %v919
    %1000 = vmatprep.subr.bf16.mxu0 0
    %1001 = vmatpush1.bf16.msra.mxu0 %v920
    %1002 = vmatprep.subr.bf16.mxu0 0
    %1003 = vmatpush1.bf16.msra.mxu0 %v921
    %1004 = vmatprep.subr.bf16.mxu0 0
    %1005 = vmatpush1.bf16.msra.mxu0 %v922
    %1006 = vmatprep.subr.bf16.mxu0 0
    %1007 = vmatpush1.bf16.msra.mxu0 %v923
    %1008 = vmatprep.subr.bf16.mxu0 0
    %1009 = vmatpush1.bf16.msra.mxu0 %v924
    %1010 = vmatprep.mubr.bf16.mxu0 %v774
    %1011 = vmatmul.mubr.bf16.gmra.mrb[0].mxu0 %v767
    %v1012 = vpop.f32.mrb[0].mxu0
    %v1013 = vadd.f32 %v976, %v1012
    %v1014 = vpop.f32.mrb[0].mxu0
    %v1015 = vpop.f32.mrb[0].mxu0
    %v1016 = vpop.f32.mrb[0].mxu0
    %1017 = vdwg.mxu0
    %1018 = vmatprep.subr.bf16.mxu0 0
    %1019 = vmatpush1.bf16.msra.mxu0 %v925
    %1020 = vmatprep.subr.bf16.mxu0 0
    %1021 = vmatpush1.bf16.msra.mxu0 %v926
    %1022 = vmatprep.subr.bf16.mxu0 0
    %1023 = vmatpush1.bf16.msra.mxu0 %v927
    %1024 = vmatprep.subr.bf16.mxu0 0
    %1025 = vmatpush1.bf16.msra.mxu0 %v928
    %1026 = vmatprep.subr.bf16.mxu0 0
    %1027 = vmatpush1.bf16.msra.mxu0 %v929
    %1028 = vmatprep.subr.bf16.mxu0 0
    %1029 = vmatpush1.bf16.msra.mxu0 %v930
    %1030 = vmatprep.subr.bf16.mxu0 0
    %1031 = vmatpush1.bf16.msra.mxu0 %v931
    %1032 = vmatprep.subr.bf16.mxu0 0
    %1033 = vmatpush1.bf16.msra.mxu0 %v932
    %1034 = vmatprep.subr.bf16.mxu0 0
    %1035 = vmatpush1.bf16.msra.mxu0 %v933
    %1036 = vmatprep.subr.bf16.mxu0 0
    %1037 = vmatpush1.bf16.msra.mxu0 %v934
    %1038 = vmatprep.subr.bf16.mxu0 0
    %1039 = vmatpush1.bf16.msra.mxu0 %v935
    %1040 = vmatprep.subr.bf16.mxu0 0
    %1041 = vmatpush1.bf16.msra.mxu0 %v936
    %1042 = vmatprep.subr.bf16.mxu0 0
    %1043 = vmatpush1.bf16.msra.mxu0 %v937
    %1044 = vmatprep.subr.bf16.mxu0 0
    %1045 = vmatpush1.bf16.msra.mxu0 %v938
    %1046 = vmatprep.subr.bf16.mxu0 0
    %1047 = vmatpush1.bf16.msra.mxu0 %v939
    %1048 = vmatprep.subr.bf16.mxu0 0
    %1049 = vmatpush1.bf16.msra.mxu0 %v940
    %1050 = vmatprep.mubr.bf16.mxu0 %v776
    %1051 = vmatmul.mubr.bf16.gmra.mrb[0].mxu0 %v775
    %v1052 = vpop.f32.mrb[0].mxu0
    %v1053 = vadd.f32 %v1013, %v1052
    %v1054 = vpop.f32.mrb[0].mxu0
    %v1055 = vpop.f32.mrb[0].mxu0
    %v1056 = vpop.f32.mrb[0].mxu0
    %1057 = vdwg.mxu0
    %v1058 = vld [vmem:[%s3] sm:$0x1]
    %v1060 = vlaneseq
    %v1061 = vshrl.u32 %v1060, 7
    %v1062 = vsub.s32 0, %v1061
    %v1063 = vrot.slane %v1058, %v1062
    %v1065 = vadd.f32 %v1053, %v1063
    %vm1066 = vcmask 1041408
    %v1067 = vsel %vm1066, %v1065, -inf
    %1068 = vmax.xlane.f32.xlu0 %v1067
    %v1069 = vpop.xlane.xlu0 %1068
    %v1070 = vsub.f32 %v1065, %v1069
    %v1071 = vmul.f32 %v1070, 1.442695
    %v1072 = vpow.pop %v1071
    %v1073 = vsel %vm1066, %v1072, 0.0
    %1074 = vadd.xlane.f32.xlu0 %v1073
    %v1075 = vpop.xlane.xlu0 %1074
    %v1076 = vrcp.pop %v1075
    %v1077 = vmul.f32 %v1075, %v1076
    %v1078 = vsub.f32 2.0, %v1077
    %v1079 = vmul.f32 %v1076, %v1078
    %v1080 = vmul.f32 %v1072, %v1079
    %1081 = vst [vmem:[#allocation2] sm:$0x3] %v1080
    // Predicated region
    $region18: #{dr_grading_subnetwork_forward.1} parent=1 // pred_check
      _
    $region19: #{dr_grading_subnetwork_forward.1} parent=1 // pred_check_branch
      %1083 = sbr.rel (0) target = $region21
    $region20: #{dr_grading_subnetwork_forward.1} parent=1 // pred_region
      %s1085 = ssub.s32 32, 32
      %1086 = vsyncadd [#allocation3], %s1085
      %s1088 = sshll.u32 [#allocation2], 4
      %s1089 = int_to_ptr.vmem [resolvable:$true] %s1088
      %1091 = dma.vmem_to_hbm [thread:$0]  %s1089, 32, %s4, [#allocation3]
    $region21: #{dr_grading_subnetwork_forward.1} parent=1 // pred_fallthru
      _
    // Predicated region
    $region22: #{dr_grading_subnetwork_forward.1} parent=1 // pred_check
      _
    $region23: #{dr_grading_subnetwork_forward.1} parent=1 // pred_check_branch
      %1093 = sbr.rel (0) target = $region25
    $region24: #{dr_grading_subnetwork_forward.1} parent=1 // pred_region
      %1094 = dma.done [#allocation3], 32
    $region25: #{dr_grading_subnetwork_forward.1} parent=1 // pred_fallthru
      _
    %1095 = vsyncpa [#allocation3], 1

</llo_original>
